<compile_context>
chip_gen: v7x
topology: tpu7x:2x2x1
jax: 0.10.0
libtpu: 0.0.40
codegen_flags: <defaults>
</compile_context>

<pallas_src>
import functools

import jax
import jax.numpy as jnp
from jax.experimental import pallas as pl
from jax.experimental.pallas import tpu as pltpu


def _round_up(x, m):
    return ((x + m - 1) // m) * m


def _affine(x_ref, w_ref, b_ref):
    """y = x @ W + B as K unrolled broadcast-FMAs on the VPU (K is tiny)."""
    x = x_ref[...]                      # (TM, K)  float32
    w = w_ref[...]                      # (K, Hp)
    y = b_ref[...]                      # (1, Hp) -> broadcasts to (TM, Hp)
    for k in range(w.shape[0]):         # static unroll; keeps the MXU out of it
        y = y + x[:, k:k + 1] * w[k:k + 1, :]
    return y


def _kernel_grouped(x_ref, w_ref, b_ref, s_ref, gamma_ref, beta_ref, out_ref,
                    *, eps):
    # G original rows packed per kernel row; LayerNorm is applied per H-lane
    # segment via the segment-averaging matrix S (block matrix of 1/H), which
    # keeps everything 2-D and the stores 128-lane dense.
    y = _affine(x_ref, w_ref, b_ref)                         # (TM, Hp) f32
    s = s_ref[...]                                           # (Hp, Hp)
    mu = jnp.dot(y, s, preferred_element_type=jnp.float32)   # per-segment mean
    c = y - mu
    var = jnp.dot(c * c, s, preferred_element_type=jnp.float32)
    out = c * jax.lax.rsqrt(var + eps) * gamma_ref[...] + beta_ref[...]
    out_ref[...] = out.astype(out_ref.dtype)


def _kernel_plain(x_ref, w_ref, b_ref, gamma_ref, beta_ref, out_ref, *, eps):
    # Hidden size already lane-dense (multiple of 128): plain reductions.
    y = _affine(x_ref, w_ref, b_ref)                         # (TM, H) f32
    mu = jnp.mean(y, axis=-1, keepdims=True)
    c = y - mu
    var = jnp.mean(c * c, axis=-1, keepdims=True)
    out = c * jax.lax.rsqrt(var + eps) * gamma_ref[...] + beta_ref[...]
    out_ref[...] = out.astype(out_ref.dtype)


def ibert_embeddings(spatials, w1, b1, w2, b2, gamma, beta,
                     *, eps=1e-12, tile_rows=1024):
    """spatials (bs, rois, din) f32 -> (bs, rois, hidden) f32.

    w1: (din, 2H), b1: (2H,), w2: (2H, H), b2: (H,), gamma/beta: (H,).
    Dropout is the eval-mode identity.
    """
    bs, rois, din = spatials.shape
    hidden = w2.shape[1]
    M = bs * rois

    # ---- Fold the two bias-only Linears into one affine map (exact). ----
    W = (w1 @ w2).astype(jnp.float32)                 # (din, H)
    B = (b1 @ w2 + b2).astype(jnp.float32)            # (H,)

    # ---- Lane-dense packing factor. ----
    if hidden % 128 == 0:
        G = 1
    elif 128 % hidden == 0:
        G = 128 // hidden
    else:
        G = 1  # TODO(synk): hidden sizes not dividing 128 keep masked stores.

    Kp = G * din
    Hp = G * hidden

    # Block-diagonal expansion of W so packed row-group g feeds lane-group g.
    if G == 1:
        Wg = W
    else:
        Wg = jnp.zeros((Kp, Hp), jnp.float32)
        for g in range(G):
            Wg = Wg.at[g * din:(g + 1) * din,
                       g * hidden:(g + 1) * hidden].set(W)
    Bg = jnp.tile(B.reshape(1, hidden), (1, G))
    gamma_g = jnp.tile(gamma.reshape(1, hidden).astype(jnp.float32), (1, G))
    beta_g = jnp.tile(beta.reshape(1, hidden).astype(jnp.float32), (1, G))

    # ---- Pack & pad rows: (M, din) -> (n_rows, G*din). ----
    x2d = spatials.reshape(M, din)
    rows_pad = _round_up(M, G)
    if rows_pad != M:
        x2d = jnp.pad(x2d, ((0, rows_pad - M), (0, 0)))
    n_rows = rows_pad // G
    xg = x2d.reshape(n_rows, Kp)

    tm = min(tile_rows, _round_up(n_rows, 8))         # sublane-aligned tile
    n_rows_pad = _round_up(n_rows, tm)
    if n_rows_pad != n_rows:
        xg = jnp.pad(xg, ((0, n_rows_pad - n_rows), (0, 0)))
    grid = (n_rows_pad // tm,)

    # ---- Operands / BlockSpecs (params pinned VMEM-resident across tiles). --
    operands = [xg, Wg, Bg]
    in_specs = [
        pl.BlockSpec((tm, Kp), lambda i: (i, 0)),
        pl.BlockSpec((Kp, Hp), lambda i: (0, 0)),
        pl.BlockSpec((1, Hp), lambda i: (0, 0)),
    ]
    if G > 1:
        seg = jnp.arange(Hp) // hidden
        S = (seg[:, None] == seg[None, :]).astype(jnp.float32) / hidden
        operands.append(S)
        in_specs.append(pl.BlockSpec((Hp, Hp), lambda i: (0, 0)))
        kernel = functools.partial(_kernel_grouped, eps=eps)
    else:
        kernel = functools.partial(_kernel_plain, eps=eps)
    operands += [gamma_g, beta_g]
    in_specs += [pl.BlockSpec((1, Hp), lambda i: (0, 0)),
                 pl.BlockSpec((1, Hp), lambda i: (0, 0))]

    cost = pl.CostEstimate(
        flops=int(2 * n_rows_pad * Kp * Hp + 10 * n_rows_pad * Hp),
        transcendentals=int(n_rows_pad * G),
        bytes_accessed=int(4 * (n_rows_pad * (Kp + Hp) + Kp * Hp + 3 * Hp
                                + (Hp * Hp if G > 1 else 0))),
    )

    out_packed = pl.pallas_call(
        kernel,
        out_shape=jax.ShapeDtypeStruct((n_rows_pad, Hp), spatials.dtype),
        grid_spec=pltpu.PrefetchScalarGridSpec(
            num_scalar_prefetch=0,
            grid=grid,
            in_specs=in_specs,
            out_specs=pl.BlockSpec((tm, Hp), lambda i: (i, 0)),
        ),
        compiler_params=pltpu.CompilerParams(
            dimension_semantics=("parallel",)),
        cost_estimate=cost,
    )(*operands)

    # Undo row packing (contiguity-preserving reshape) and drop padding.
    out2d = out_packed.reshape(n_rows_pad * G, hidden)[:M]
    return out2d.reshape(bs, rois, hidden)


def _init_params(key, din, hidden_size):
    """Deterministic synthetic parameters (shapes match the nn.Module)."""
    hmid = 2 * hidden_size  # SpatialEmbedding hidden = 2 * config.hidden_size
    k1, k2, k3, k4 = jax.random.split(key, 4)
    bound1 = 1.0 / (din ** 0.5)
    bound2 = 1.0 / (hmid ** 0.5)
    w1 = jax.random.uniform(k1, (din, hmid), jnp.float32, -bound1, bound1)
    b1 = jax.random.uniform(k2, (hmid,), jnp.float32, -bound1, bound1)
    w2 = jax.random.uniform(k3, (hmid, hidden_size), jnp.float32, -bound2, bound2)
    b2 = jax.random.uniform(k4, (hidden_size,), jnp.float32, -bound2, bound2)
    gamma = jnp.ones((hidden_size,), jnp.float32)   # LayerNorm weight
    beta = jnp.zeros((hidden_size,), jnp.float32)   # LayerNorm bias
    return w1, b1, w2, b2, gamma, beta


if __name__ == "__main__":
    bs, rois, din, hidden_size = 2, 8, 6, 32

    key = jax.random.PRNGKey(0)
    kx, kp = jax.random.split(key)
    spatials = jax.random.uniform(kx, (bs, rois, din), jnp.float32)
    w1, b1, w2, b2, gamma, beta = _init_params(kp, din, hidden_size)

    out = ibert_embeddings(spatials, w1, b1, w2, b2, gamma, beta)
    jax.block_until_ready(out)

    # Pure-JAX reference: un-fused two-Linear + LayerNorm(eps=1e-12) path.
    h_ref = spatials.reshape(-1, din) @ w1 + b1
    y_ref = h_ref @ w2 + b2
    mu = y_ref.mean(-1, keepdims=True)
    var = ((y_ref - mu) ** 2).mean(-1, keepdims=True)
    ref = ((y_ref - mu) / jnp.sqrt(var + 1e-12)) * gamma + beta
    ref = ref.reshape(bs, rois, hidden_size)
    assert jnp.allclose(out, ref, atol=1e-4, rtol=1e-4), "mismatch vs reference"

    print("KERNEL_OK")
</pallas_src>

<mosaic_0001>
module attributes {stable_mosaic.version = 11 : i64} {
  func.func @_kernel_grouped(%arg0: i32, %arg1: memref<8x24xf32, #tpu.memory_space<vmem>>, %arg2: memref<24x128xf32, #tpu.memory_space<vmem>>, %arg3: memref<1x128xf32, #tpu.memory_space<vmem>>, %arg4: memref<128x128xf32, #tpu.memory_space<vmem>>, %arg5: memref<1x128xf32, #tpu.memory_space<vmem>>, %arg6: memref<1x128xf32, #tpu.memory_space<vmem>>, %arg7: memref<8x128xf32, #tpu.memory_space<vmem>>) attributes {dimension_semantics = [#tpu.dimension_semantics<parallel>], iteration_bounds = array<i64: 1>, scalar_prefetch = 0 : i64, scratch_operands = 0 : i64, tpu.core_type = #tpu.core_type<tc>, window_params = [{transform_indices = @transform_0, window_bounds = array<i64: 8, 24>}, {pipeline_mode = #tpu.pipeline_mode<synchronous>, transform_indices = @transform_1, window_bounds = array<i64: 24, 128>}, {pipeline_mode = #tpu.pipeline_mode<synchronous>, transform_indices = @transform_2, window_bounds = array<i64: 1, 128>}, {pipeline_mode = #tpu.pipeline_mode<synchronous>, transform_indices = @transform_3, window_bounds = array<i64: 128, 128>}, {pipeline_mode = #tpu.pipeline_mode<synchronous>, transform_indices = @transform_4, window_bounds = array<i64: 1, 128>}, {pipeline_mode = #tpu.pipeline_mode<synchronous>, transform_indices = @transform_5, window_bounds = array<i64: 1, 128>}, {transform_indices = @transform_6, window_bounds = array<i64: 8, 128>}]} {
    %c0 = arith.constant 0 : index
    %c0_0 = arith.constant 0 : index
    %0 = vector.load %arg1[%c0, %c0_0] : memref<8x24xf32, #tpu.memory_space<vmem>>, vector<8x24xf32>
    %c0_1 = arith.constant 0 : index
    %c0_2 = arith.constant 0 : index
    %1 = vector.load %arg2[%c0_1, %c0_2] : memref<24x128xf32, #tpu.memory_space<vmem>>, vector<24x128xf32>
    %c0_3 = arith.constant 0 : index
    %c0_4 = arith.constant 0 : index
    %2 = vector.load %arg3[%c0_3, %c0_4] : memref<1x128xf32, #tpu.memory_space<vmem>>, vector<1x128xf32>
    %3 = vector.extract_strided_slice %0 {offsets = [0, 0], sizes = [8, 1], strides = [1, 1]} : vector<8x24xf32> to vector<8x1xf32>
    %4 = vector.extract_strided_slice %1 {offsets = [0, 0], sizes = [1, 128], strides = [1, 1]} : vector<24x128xf32> to vector<1x128xf32>
    %5 = vector.broadcast %3 : vector<8x1xf32> to vector<8x128xf32>
    %6 = vector.broadcast %4 : vector<1x128xf32> to vector<8x128xf32>
    %7 = arith.mulf %5, %6 : vector<8x128xf32>
    %8 = vector.broadcast %2 : vector<1x128xf32> to vector<8x128xf32>
    %9 = arith.addf %8, %7 : vector<8x128xf32>
    %10 = vector.extract_strided_slice %0 {offsets = [0, 1], sizes = [8, 1], strides = [1, 1]} : vector<8x24xf32> to vector<8x1xf32>
    %11 = vector.extract_strided_slice %1 {offsets = [1, 0], sizes = [1, 128], strides = [1, 1]} : vector<24x128xf32> to vector<1x128xf32>
    %12 = vector.broadcast %10 : vector<8x1xf32> to vector<8x128xf32>
    %13 = vector.broadcast %11 : vector<1x128xf32> to vector<8x128xf32>
    %14 = arith.mulf %12, %13 : vector<8x128xf32>
    %15 = arith.addf %9, %14 : vector<8x128xf32>
    %16 = vector.extract_strided_slice %0 {offsets = [0, 2], sizes = [8, 1], strides = [1, 1]} : vector<8x24xf32> to vector<8x1xf32>
    %17 = vector.extract_strided_slice %1 {offsets = [2, 0], sizes = [1, 128], strides = [1, 1]} : vector<24x128xf32> to vector<1x128xf32>
    %18 = vector.broadcast %16 : vector<8x1xf32> to vector<8x128xf32>
    %19 = vector.broadcast %17 : vector<1x128xf32> to vector<8x128xf32>
    %20 = arith.mulf %18, %19 : vector<8x128xf32>
    %21 = arith.addf %15, %20 : vector<8x128xf32>
    %22 = vector.extract_strided_slice %0 {offsets = [0, 3], sizes = [8, 1], strides = [1, 1]} : vector<8x24xf32> to vector<8x1xf32>
    %23 = vector.extract_strided_slice %1 {offsets = [3, 0], sizes = [1, 128], strides = [1, 1]} : vector<24x128xf32> to vector<1x128xf32>
    %24 = vector.broadcast %22 : vector<8x1xf32> to vector<8x128xf32>
    %25 = vector.broadcast %23 : vector<1x128xf32> to vector<8x128xf32>
    %26 = arith.mulf %24, %25 : vector<8x128xf32>
    %27 = arith.addf %21, %26 : vector<8x128xf32>
    %28 = vector.extract_strided_slice %0 {offsets = [0, 4], sizes = [8, 1], strides = [1, 1]} : vector<8x24xf32> to vector<8x1xf32>
    %29 = vector.extract_strided_slice %1 {offsets = [4, 0], sizes = [1, 128], strides = [1, 1]} : vector<24x128xf32> to vector<1x128xf32>
    %30 = vector.broadcast %28 : vector<8x1xf32> to vector<8x128xf32>
    %31 = vector.broadcast %29 : vector<1x128xf32> to vector<8x128xf32>
    %32 = arith.mulf %30, %31 : vector<8x128xf32>
    %33 = arith.addf %27, %32 : vector<8x128xf32>
    %34 = vector.extract_strided_slice %0 {offsets = [0, 5], sizes = [8, 1], strides = [1, 1]} : vector<8x24xf32> to vector<8x1xf32>
    %35 = vector.extract_strided_slice %1 {offsets = [5, 0], sizes = [1, 128], strides = [1, 1]} : vector<24x128xf32> to vector<1x128xf32>
    %36 = vector.broadcast %34 : vector<8x1xf32> to vector<8x128xf32>
    %37 = vector.broadcast %35 : vector<1x128xf32> to vector<8x128xf32>
    %38 = arith.mulf %36, %37 : vector<8x128xf32>
    %39 = arith.addf %33, %38 : vector<8x128xf32>
    %40 = vector.extract_strided_slice %0 {offsets = [0, 6], sizes = [8, 1], strides = [1, 1]} : vector<8x24xf32> to vector<8x1xf32>
    %41 = vector.extract_strided_slice %1 {offsets = [6, 0], sizes = [1, 128], strides = [1, 1]} : vector<24x128xf32> to vector<1x128xf32>
    %42 = vector.broadcast %40 : vector<8x1xf32> to vector<8x128xf32>
    %43 = vector.broadcast %41 : vector<1x128xf32> to vector<8x128xf32>
    %44 = arith.mulf %42, %43 : vector<8x128xf32>
    %45 = arith.addf %39, %44 : vector<8x128xf32>
    %46 = vector.extract_strided_slice %0 {offsets = [0, 7], sizes = [8, 1], strides = [1, 1]} : vector<8x24xf32> to vector<8x1xf32>
    %47 = vector.extract_strided_slice %1 {offsets = [7, 0], sizes = [1, 128], strides = [1, 1]} : vector<24x128xf32> to vector<1x128xf32>
    %48 = vector.broadcast %46 : vector<8x1xf32> to vector<8x128xf32>
    %49 = vector.broadcast %47 : vector<1x128xf32> to vector<8x128xf32>
    %50 = arith.mulf %48, %49 : vector<8x128xf32>
    %51 = arith.addf %45, %50 : vector<8x128xf32>
    %52 = vector.extract_strided_slice %0 {offsets = [0, 8], sizes = [8, 1], strides = [1, 1]} : vector<8x24xf32> to vector<8x1xf32>
    %53 = vector.extract_strided_slice %1 {offsets = [8, 0], sizes = [1, 128], strides = [1, 1]} : vector<24x128xf32> to vector<1x128xf32>
    %54 = vector.broadcast %52 : vector<8x1xf32> to vector<8x128xf32>
    %55 = vector.broadcast %53 : vector<1x128xf32> to vector<8x128xf32>
    %56 = arith.mulf %54, %55 : vector<8x128xf32>
    %57 = arith.addf %51, %56 : vector<8x128xf32>
    %58 = vector.extract_strided_slice %0 {offsets = [0, 9], sizes = [8, 1], strides = [1, 1]} : vector<8x24xf32> to vector<8x1xf32>
    %59 = vector.extract_strided_slice %1 {offsets = [9, 0], sizes = [1, 128], strides = [1, 1]} : vector<24x128xf32> to vector<1x128xf32>
    %60 = vector.broadcast %58 : vector<8x1xf32> to vector<8x128xf32>
    %61 = vector.broadcast %59 : vector<1x128xf32> to vector<8x128xf32>
    %62 = arith.mulf %60, %61 : vector<8x128xf32>
    %63 = arith.addf %57, %62 : vector<8x128xf32>
    %64 = vector.extract_strided_slice %0 {offsets = [0, 10], sizes = [8, 1], strides = [1, 1]} : vector<8x24xf32> to vector<8x1xf32>
    %65 = vector.extract_strided_slice %1 {offsets = [10, 0], sizes = [1, 128], strides = [1, 1]} : vector<24x128xf32> to vector<1x128xf32>
    %66 = vector.broadcast %64 : vector<8x1xf32> to vector<8x128xf32>
    %67 = vector.broadcast %65 : vector<1x128xf32> to vector<8x128xf32>
    %68 = arith.mulf %66, %67 : vector<8x128xf32>
    %69 = arith.addf %63, %68 : vector<8x128xf32>
    %70 = vector.extract_strided_slice %0 {offsets = [0, 11], sizes = [8, 1], strides = [1, 1]} : vector<8x24xf32> to vector<8x1xf32>
    %71 = vector.extract_strided_slice %1 {offsets = [11, 0], sizes = [1, 128], strides = [1, 1]} : vector<24x128xf32> to vector<1x128xf32>
    %72 = vector.broadcast %70 : vector<8x1xf32> to vector<8x128xf32>
    %73 = vector.broadcast %71 : vector<1x128xf32> to vector<8x128xf32>
    %74 = arith.mulf %72, %73 : vector<8x128xf32>
    %75 = arith.addf %69, %74 : vector<8x128xf32>
    %76 = vector.extract_strided_slice %0 {offsets = [0, 12], sizes = [8, 1], strides = [1, 1]} : vector<8x24xf32> to vector<8x1xf32>
    %77 = vector.extract_strided_slice %1 {offsets = [12, 0], sizes = [1, 128], strides = [1, 1]} : vector<24x128xf32> to vector<1x128xf32>
    %78 = vector.broadcast %76 : vector<8x1xf32> to vector<8x128xf32>
    %79 = vector.broadcast %77 : vector<1x128xf32> to vector<8x128xf32>
    %80 = arith.mulf %78, %79 : vector<8x128xf32>
    %81 = arith.addf %75, %80 : vector<8x128xf32>
    %82 = vector.extract_strided_slice %0 {offsets = [0, 13], sizes = [8, 1], strides = [1, 1]} : vector<8x24xf32> to vector<8x1xf32>
    %83 = vector.extract_strided_slice %1 {offsets = [13, 0], sizes = [1, 128], strides = [1, 1]} : vector<24x128xf32> to vector<1x128xf32>
    %84 = vector.broadcast %82 : vector<8x1xf32> to vector<8x128xf32>
    %85 = vector.broadcast %83 : vector<1x128xf32> to vector<8x128xf32>
    %86 = arith.mulf %84, %85 : vector<8x128xf32>
    %87 = arith.addf %81, %86 : vector<8x128xf32>
    %88 = vector.extract_strided_slice %0 {offsets = [0, 14], sizes = [8, 1], strides = [1, 1]} : vector<8x24xf32> to vector<8x1xf32>
    %89 = vector.extract_strided_slice %1 {offsets = [14, 0], sizes = [1, 128], strides = [1, 1]} : vector<24x128xf32> to vector<1x128xf32>
    %90 = vector.broadcast %88 : vector<8x1xf32> to vector<8x128xf32>
    %91 = vector.broadcast %89 : vector<1x128xf32> to vector<8x128xf32>
    %92 = arith.mulf %90, %91 : vector<8x128xf32>
    %93 = arith.addf %87, %92 : vector<8x128xf32>
    %94 = vector.extract_strided_slice %0 {offsets = [0, 15], sizes = [8, 1], strides = [1, 1]} : vector<8x24xf32> to vector<8x1xf32>
    %95 = vector.extract_strided_slice %1 {offsets = [15, 0], sizes = [1, 128], strides = [1, 1]} : vector<24x128xf32> to vector<1x128xf32>
    %96 = vector.broadcast %94 : vector<8x1xf32> to vector<8x128xf32>
    %97 = vector.broadcast %95 : vector<1x128xf32> to vector<8x128xf32>
    %98 = arith.mulf %96, %97 : vector<8x128xf32>
    %99 = arith.addf %93, %98 : vector<8x128xf32>
    %100 = vector.extract_strided_slice %0 {offsets = [0, 16], sizes = [8, 1], strides = [1, 1]} : vector<8x24xf32> to vector<8x1xf32>
    %101 = vector.extract_strided_slice %1 {offsets = [16, 0], sizes = [1, 128], strides = [1, 1]} : vector<24x128xf32> to vector<1x128xf32>
    %102 = vector.broadcast %100 : vector<8x1xf32> to vector<8x128xf32>
    %103 = vector.broadcast %101 : vector<1x128xf32> to vector<8x128xf32>
    %104 = arith.mulf %102, %103 : vector<8x128xf32>
    %105 = arith.addf %99, %104 : vector<8x128xf32>
    %106 = vector.extract_strided_slice %0 {offsets = [0, 17], sizes = [8, 1], strides = [1, 1]} : vector<8x24xf32> to vector<8x1xf32>
    %107 = vector.extract_strided_slice %1 {offsets = [17, 0], sizes = [1, 128], strides = [1, 1]} : vector<24x128xf32> to vector<1x128xf32>
    %108 = vector.broadcast %106 : vector<8x1xf32> to vector<8x128xf32>
    %109 = vector.broadcast %107 : vector<1x128xf32> to vector<8x128xf32>
    %110 = arith.mulf %108, %109 : vector<8x128xf32>
    %111 = arith.addf %105, %110 : vector<8x128xf32>
    %112 = vector.extract_strided_slice %0 {offsets = [0, 18], sizes = [8, 1], strides = [1, 1]} : vector<8x24xf32> to vector<8x1xf32>
    %113 = vector.extract_strided_slice %1 {offsets = [18, 0], sizes = [1, 128], strides = [1, 1]} : vector<24x128xf32> to vector<1x128xf32>
    %114 = vector.broadcast %112 : vector<8x1xf32> to vector<8x128xf32>
    %115 = vector.broadcast %113 : vector<1x128xf32> to vector<8x128xf32>
    %116 = arith.mulf %114, %115 : vector<8x128xf32>
    %117 = arith.addf %111, %116 : vector<8x128xf32>
    %118 = vector.extract_strided_slice %0 {offsets = [0, 19], sizes = [8, 1], strides = [1, 1]} : vector<8x24xf32> to vector<8x1xf32>
    %119 = vector.extract_strided_slice %1 {offsets = [19, 0], sizes = [1, 128], strides = [1, 1]} : vector<24x128xf32> to vector<1x128xf32>
    %120 = vector.broadcast %118 : vector<8x1xf32> to vector<8x128xf32>
    %121 = vector.broadcast %119 : vector<1x128xf32> to vector<8x128xf32>
    %122 = arith.mulf %120, %121 : vector<8x128xf32>
    %123 = arith.addf %117, %122 : vector<8x128xf32>
    %124 = vector.extract_strided_slice %0 {offsets = [0, 20], sizes = [8, 1], strides = [1, 1]} : vector<8x24xf32> to vector<8x1xf32>
    %125 = vector.extract_strided_slice %1 {offsets = [20, 0], sizes = [1, 128], strides = [1, 1]} : vector<24x128xf32> to vector<1x128xf32>
    %126 = vector.broadcast %124 : vector<8x1xf32> to vector<8x128xf32>
    %127 = vector.broadcast %125 : vector<1x128xf32> to vector<8x128xf32>
    %128 = arith.mulf %126, %127 : vector<8x128xf32>
    %129 = arith.addf %123, %128 : vector<8x128xf32>
    %130 = vector.extract_strided_slice %0 {offsets = [0, 21], sizes = [8, 1], strides = [1, 1]} : vector<8x24xf32> to vector<8x1xf32>
    %131 = vector.extract_strided_slice %1 {offsets = [21, 0], sizes = [1, 128], strides = [1, 1]} : vector<24x128xf32> to vector<1x128xf32>
    %132 = vector.broadcast %130 : vector<8x1xf32> to vector<8x128xf32>
    %133 = vector.broadcast %131 : vector<1x128xf32> to vector<8x128xf32>
    %134 = arith.mulf %132, %133 : vector<8x128xf32>
    %135 = arith.addf %129, %134 : vector<8x128xf32>
    %136 = vector.extract_strided_slice %0 {offsets = [0, 22], sizes = [8, 1], strides = [1, 1]} : vector<8x24xf32> to vector<8x1xf32>
    %137 = vector.extract_strided_slice %1 {offsets = [22, 0], sizes = [1, 128], strides = [1, 1]} : vector<24x128xf32> to vector<1x128xf32>
    %138 = vector.broadcast %136 : vector<8x1xf32> to vector<8x128xf32>
    %139 = vector.broadcast %137 : vector<1x128xf32> to vector<8x128xf32>
    %140 = arith.mulf %138, %139 : vector<8x128xf32>
    %141 = arith.addf %135, %140 : vector<8x128xf32>
    %142 = vector.extract_strided_slice %0 {offsets = [0, 23], sizes = [8, 1], strides = [1, 1]} : vector<8x24xf32> to vector<8x1xf32>
    %143 = vector.extract_strided_slice %1 {offsets = [23, 0], sizes = [1, 128], strides = [1, 1]} : vector<24x128xf32> to vector<1x128xf32>
    %144 = vector.broadcast %142 : vector<8x1xf32> to vector<8x128xf32>
    %145 = vector.broadcast %143 : vector<1x128xf32> to vector<8x128xf32>
    %146 = arith.mulf %144, %145 : vector<8x128xf32>
    %147 = arith.addf %141, %146 : vector<8x128xf32>
    %c0_5 = arith.constant 0 : index
    %c0_6 = arith.constant 0 : index
    %148 = vector.load %arg4[%c0_5, %c0_6] : memref<128x128xf32, #tpu.memory_space<vmem>>, vector<128x128xf32>
    %cst = arith.constant dense<0.000000e+00> : vector<8x128xf32>
    %149 = tpu.matmul %147, %148, %cst {dimension_numbers = #tpu.dot_dimension_numbers<[1], [0], [0], [1], [0, 0, 1, 1], [], []>} : vector<8x128xf32>, vector<128x128xf32>, vector<8x128xf32> -> vector<8x128xf32>
    %150 = arith.subf %147, %149 : vector<8x128xf32>
    %151 = arith.mulf %150, %150 : vector<8x128xf32>
    %cst_7 = arith.constant dense<0.000000e+00> : vector<8x128xf32>
    %152 = tpu.matmul %151, %148, %cst_7 {dimension_numbers = #tpu.dot_dimension_numbers<[1], [0], [0], [1], [0, 0, 1, 1], [], []>} : vector<8x128xf32>, vector<128x128xf32>, vector<8x128xf32> -> vector<8x128xf32>
    %cst_8 = arith.constant 9.99999996E-13 : f32
    %153 = vector.broadcast %cst_8 : f32 to vector<8x128xf32>
    %154 = arith.addf %152, %153 : vector<8x128xf32>
    %155 = math.rsqrt %154 : vector<8x128xf32>
    %156 = arith.mulf %150, %155 : vector<8x128xf32>
    %c0_9 = arith.constant 0 : index
    %c0_10 = arith.constant 0 : index
    %157 = vector.load %arg5[%c0_9, %c0_10] : memref<1x128xf32, #tpu.memory_space<vmem>>, vector<1x128xf32>
    %158 = vector.broadcast %157 : vector<1x128xf32> to vector<8x128xf32>
    %159 = arith.mulf %156, %158 : vector<8x128xf32>
    %c0_11 = arith.constant 0 : index
    %c0_12 = arith.constant 0 : index
    %160 = vector.load %arg6[%c0_11, %c0_12] : memref<1x128xf32, #tpu.memory_space<vmem>>, vector<1x128xf32>
    %161 = vector.broadcast %160 : vector<1x128xf32> to vector<8x128xf32>
    %162 = arith.addf %159, %161 : vector<8x128xf32>
    %c0_13 = arith.constant 0 : index
    %c0_14 = arith.constant 0 : index
    %163 = vector.load %arg7[%c0_13, %c0_14] : memref<8x128xf32, #tpu.memory_space<vmem>>, vector<8x128xf32>
    tpu.vector_store %arg7[%c0_13, %c0_14], %162 {strides = array<i32>} : memref<8x128xf32, #tpu.memory_space<vmem>>, vector<8x128xf32>,
    return
  }
  func.func @transform_0(%arg0: i32) -> (i32, i32) {
    %c0_i32 = arith.constant 0 : i32
    %c0_i32_0 = arith.constant 0 : i32
    return %arg0, %c0_i32 : i32, i32
  }
  func.func @transform_1(%arg0: i32) -> (i32, i32) {
    %c0_i32 = arith.constant 0 : i32
    %c0_i32_0 = arith.constant 0 : i32
    %c0_i32_1 = arith.constant 0 : i32
    return %c0_i32, %c0_i32_0 : i32, i32
  }
  func.func @transform_2(%arg0: i32) -> (i32, i32) {
    %c0_i32 = arith.constant 0 : i32
    %c0_i32_0 = arith.constant 0 : i32
    %c0_i32_1 = arith.constant 0 : i32
    return %c0_i32, %c0_i32_0 : i32, i32
  }
  func.func @transform_3(%arg0: i32) -> (i32, i32) {
    %c0_i32 = arith.constant 0 : i32
    %c0_i32_0 = arith.constant 0 : i32
    %c0_i32_1 = arith.constant 0 : i32
    return %c0_i32, %c0_i32_0 : i32, i32
  }
  func.func @transform_4(%arg0: i32) -> (i32, i32) {
    %c0_i32 = arith.constant 0 : i32
    %c0_i32_0 = arith.constant 0 : i32
    %c0_i32_1 = arith.constant 0 : i32
    return %c0_i32, %c0_i32_0 : i32, i32
  }
  func.func @transform_5(%arg0: i32) -> (i32, i32) {
    %c0_i32 = arith.constant 0 : i32
    %c0_i32_0 = arith.constant 0 : i32
    %c0_i32_1 = arith.constant 0 : i32
    return %c0_i32, %c0_i32_0 : i32, i32
  }
  func.func @transform_6(%arg0: i32) -> (i32, i32) {
    %c0_i32 = arith.constant 0 : i32
    %c0_i32_0 = arith.constant 0 : i32
    return %arg0, %c0_i32 : i32, i32
  }
}

</mosaic_0001>

<llo_original>
// kernel: tpu_custom_call.1
$region0: #{tpu_custom_call.1}
  #allocation0 [shape = 'u32[]', space=smem, size = 0x4, offset = 0x4, fixed_abs, tag = 'smem constant byte address 0x4 - core index']
  #allocation1 [shape = 'u32[144,128]{1,0:T(1,128)}', space=vmem, size = 0x12000, scoped, tag = 'internal scratch']
  %s0 = inlined_call_operand.hbm [shape: f32[8,24], index: 0, kind: input, shape index: {}]
  %s1 = inlined_call_operand.hbm [shape: f32[24,128], index: 1, kind: input, shape index: {}]
  %s2 = inlined_call_operand.vmem [shape: f32[1,128], index: 2, kind: input, shape index: {}]
  %s3 = inlined_call_operand.hbm [shape: f32[128,128], index: 3, kind: input, shape index: {}]
  %s4 = inlined_call_operand.vmem [shape: f32[1,128], index: 4, kind: input, shape index: {}]
  %s5 = inlined_call_operand.vmem [shape: f32[1,128], index: 5, kind: input, shape index: {}]
  %s6 = inlined_call_operand.hbm [shape: f32[8,128], index: 6, kind: output, shape index: {}]
  %s7 = sld [smem:[#allocation0]]
  $region46: #{tpu_custom_call.1} parent=0
    _
  %s9 = ssub.s32 1, %s7
  %s10 = scalar_select 0, %s9, %s7
  $region1: #{tpu_custom_call.1} parent=0
    #allocation2 [shape = 'u8[4096]{0}', space=vmem, size = 0x1000, scoped, tag = 'input window, operand 0, single buffered']
    #allocation3 [shape = 's32[1]{0}', space=sflag, size = 0x4, scoped, tag = 'scoped memory for tpu_custom_call.1']
    #allocation4 [shape = 's32[1]{0}', space=sflag, size = 0x4, scoped, tag = 'scoped memory for tpu_custom_call.1']
    #allocation5 [shape = 'u8[12288]{0}', space=vmem, size = 0x3000, scoped, tag = 'input window, operand 1, single buffered']
    #allocation6 [shape = 's32[1]{0}', space=sflag, size = 0x4, scoped, tag = 'scoped memory for tpu_custom_call.1']
    #allocation7 [shape = 'u8[65536]{0}', space=vmem, size = 0x10000, scoped, tag = 'input window, operand 3, single buffered']
    #allocation8 [shape = 'u8[4096]{0}', space=vmem, size = 0x1000, scoped, tag = 'output window, operand 0, single buffered']
    %11 = vsyncpa [#allocation3], 0
    %12 = vsyncpa [#allocation6], 0
    %13 = vsyncpa [#allocation4], 0
    // Predicated region
    $region2: #{tpu_custom_call.1} parent=1 // pred_check
      _
    $region3: #{tpu_custom_call.1} parent=1 // pred_check_branch
      %15 = sbr.rel (0) target = $region5
    $region4: #{tpu_custom_call.1} parent=1 // pred_region
      %s17 = ssub.s32 128, 128
      %18 = vsyncadd [#allocation3], %s17
      %s20 = sshll.u32 [#allocation2], 4
      %s21 = int_to_ptr.vmem [resolvable:$true] %s20
      %23 = dma.hbm_to_vmem [thread:$0]  %s0, 128, %s21, [#allocation3]
    $region5: #{tpu_custom_call.1} parent=1 // pred_fallthru
      _
    // Predicated region
    $region6: #{tpu_custom_call.1} parent=1 // pred_check
      _
    $region7: #{tpu_custom_call.1} parent=1 // pred_check_branch
      %25 = sbr.rel (0) target = $region9
    $region8: #{tpu_custom_call.1} parent=1 // pred_region
      %s27 = ssub.s32 384, 384
      %28 = vsyncadd [#allocation6], %s27
      %s29 = sshll.u32 [#allocation5], 4
      %s30 = int_to_ptr.vmem [resolvable:$true] %s29
      %35 = dma.hbm_to_vmem [thread:$0]  %s1, 384, %s30, [#allocation6], 128, 128, 8
    $region9: #{tpu_custom_call.1} parent=1 // pred_fallthru
      _
    // Predicated region
    $region10: #{tpu_custom_call.1} parent=1 // pred_check
      _
    $region11: #{tpu_custom_call.1} parent=1 // pred_check_branch
      %37 = sbr.rel (0) target = $region13
    $region12: #{tpu_custom_call.1} parent=1 // pred_region
      _
    $region13: #{tpu_custom_call.1} parent=1 // pred_fallthru
      _
    // Predicated region
    $region14: #{tpu_custom_call.1} parent=1 // pred_check
      _
    $region15: #{tpu_custom_call.1} parent=1 // pred_check_branch
      %39 = sbr.rel (0) target = $region17
    $region16: #{tpu_custom_call.1} parent=1 // pred_region
      %s41 = ssub.s32 2048, 2048
      %42 = vsyncadd [#allocation6], %s41
      %s43 = sshll.u32 [#allocation7], 4
      %s44 = int_to_ptr.vmem [resolvable:$true] %s43
      %49 = dma.hbm_to_vmem [thread:$0]  %s3, 2048, %s44, [#allocation6], 128, 128, 8
    $region17: #{tpu_custom_call.1} parent=1 // pred_fallthru
      _
    // Predicated region
    $region18: #{tpu_custom_call.1} parent=1 // pred_check
      _
    $region19: #{tpu_custom_call.1} parent=1 // pred_check_branch
      %51 = sbr.rel (0) target = $region21
    $region20: #{tpu_custom_call.1} parent=1 // pred_region
      _
    $region21: #{tpu_custom_call.1} parent=1 // pred_fallthru
      _
    // Predicated region
    $region22: #{tpu_custom_call.1} parent=1 // pred_check
      _
    $region23: #{tpu_custom_call.1} parent=1 // pred_check_branch
      %53 = sbr.rel (0) target = $region25
    $region24: #{tpu_custom_call.1} parent=1 // pred_region
      _
    $region25: #{tpu_custom_call.1} parent=1 // pred_fallthru
      _
    // Predicated region
    $region26: #{tpu_custom_call.1} parent=1 // pred_check
      _
    $region27: #{tpu_custom_call.1} parent=1 // pred_check_branch
      %55 = sbr.rel (0) target = $region29
    $region28: #{tpu_custom_call.1} parent=1 // pred_region
      %56 = dma.done [#allocation3], 128
    $region29: #{tpu_custom_call.1} parent=1 // pred_fallthru
      _
    // Predicated region
    $region30: #{tpu_custom_call.1} parent=1 // pred_check
      _
    $region31: #{tpu_custom_call.1} parent=1 // pred_check_branch
      %58 = sbr.rel (0) target = $region33
    $region32: #{tpu_custom_call.1} parent=1 // pred_region
      %59 = dma.done [#allocation6], 384
    $region33: #{tpu_custom_call.1} parent=1 // pred_fallthru
      _
    // Predicated region
    $region34: #{tpu_custom_call.1} parent=1 // pred_check
      _
    $region35: #{tpu_custom_call.1} parent=1 // pred_check_branch
      %61 = sbr.rel (0) target = $region37
    $region36: #{tpu_custom_call.1} parent=1 // pred_region
      %62 = dma.done [#allocation6], 2048
    $region37: #{tpu_custom_call.1} parent=1 // pred_fallthru
      _
    %v63 = vld [vmem:[#allocation2] sm:$0xff]
    %v64 = vld [vmem:[#allocation5] sm:$0xff]
    %v65 = vld [vmem:[#allocation5 + $0x8] sm:$0xff]
    %v66 = vld [vmem:[#allocation5 + $0x10] sm:$0xff]
    %v67 = vld [vmem:[%s2] sm:$0x1]
    %69 = vset.pattern.permute.xlu0 0
    %70 = vperm.xlu0 %69, %v63
    %v71 = vpop.permute.xlu0 %70
    %v73 = vlaneseq
    %v74 = vshrl.u32 %v73, 7
    %v75 = vsub.s32 0, %v74
    %v76 = vrot.slane %v64, %v75
    %v77 = vmul.f32 %v71, %v76
    %v79 = vlaneseq
    %v80 = vshrl.u32 %v79, 7
    %v81 = vsub.s32 0, %v80
    %v82 = vrot.slane %v67, %v81
    %v84 = vadd.f32 %v82, %v77
    %85 = vset.pattern.permute.xlu0 1
    %86 = vperm.xlu0 %85, %v63
    %v87 = vpop.permute.xlu0 %86
    %v89 = vlaneseq
    %v90 = vshrl.u32 %v89, 7
    %v91 = vsub.s32 1, %v90
    %v92 = vrot.slane %v64, %v91
    %v93 = vmul.f32 %v87, %v92
    %v94 = vadd.f32 %v84, %v93
    %95 = vset.pattern.permute.xlu0 2
    %96 = vperm.xlu0 %95, %v63
    %v97 = vpop.permute.xlu0 %96
    %v99 = vlaneseq
    %v100 = vshrl.u32 %v99, 7
    %v101 = vsub.s32 2, %v100
    %v102 = vrot.slane %v64, %v101
    %v103 = vmul.f32 %v97, %v102
    %v104 = vadd.f32 %v94, %v103
    %105 = vset.pattern.permute.xlu0 3
    %106 = vperm.xlu0 %105, %v63
    %v107 = vpop.permute.xlu0 %106
    %v109 = vlaneseq
    %v110 = vshrl.u32 %v109, 7
    %v111 = vsub.s32 3, %v110
    %v112 = vrot.slane %v64, %v111
    %v113 = vmul.f32 %v107, %v112
    %v114 = vadd.f32 %v104, %v113
    %115 = vset.pattern.permute.xlu0 4
    %116 = vperm.xlu0 %115, %v63
    %v117 = vpop.permute.xlu0 %116
    %v119 = vlaneseq
    %v120 = vshrl.u32 %v119, 7
    %v121 = vsub.s32 4, %v120
    %v122 = vrot.slane %v64, %v121
    %v123 = vmul.f32 %v117, %v122
    %v124 = vadd.f32 %v114, %v123
    %125 = vset.pattern.permute.xlu0 5
    %126 = vperm.xlu0 %125, %v63
    %v127 = vpop.permute.xlu0 %126
    %v129 = vlaneseq
    %v130 = vshrl.u32 %v129, 7
    %v131 = vsub.s32 5, %v130
    %v132 = vrot.slane %v64, %v131
    %v133 = vmul.f32 %v127, %v132
    %v134 = vadd.f32 %v124, %v133
    %135 = vset.pattern.permute.xlu0 6
    %136 = vperm.xlu0 %135, %v63
    %v137 = vpop.permute.xlu0 %136
    %v139 = vlaneseq
    %v140 = vshrl.u32 %v139, 7
    %v141 = vsub.s32 6, %v140
    %v142 = vrot.slane %v64, %v141
    %v143 = vmul.f32 %v137, %v142
    %v144 = vadd.f32 %v134, %v143
    %145 = vset.pattern.permute.xlu0 7
    %146 = vperm.xlu0 %145, %v63
    %v147 = vpop.permute.xlu0 %146
    %v149 = vlaneseq
    %v150 = vshrl.u32 %v149, 7
    %v151 = vsub.s32 7, %v150
    %v152 = vrot.slane %v64, %v151
    %v153 = vmul.f32 %v147, %v152
    %v154 = vadd.f32 %v144, %v153
    %155 = vset.pattern.permute.xlu0 8
    %156 = vperm.xlu0 %155, %v63
    %v157 = vpop.permute.xlu0 %156
    %v159 = vlaneseq
    %v160 = vshrl.u32 %v159, 7
    %v161 = vsub.s32 0, %v160
    %v162 = vrot.slane %v65, %v161
    %v163 = vmul.f32 %v157, %v162
    %v164 = vadd.f32 %v154, %v163
    %165 = vset.pattern.permute.xlu0 9
    %166 = vperm.xlu0 %165, %v63
    %v167 = vpop.permute.xlu0 %166
    %v169 = vlaneseq
    %v170 = vshrl.u32 %v169, 7
    %v171 = vsub.s32 1, %v170
    %v172 = vrot.slane %v65, %v171
    %v173 = vmul.f32 %v167, %v172
    %v174 = vadd.f32 %v164, %v173
    %175 = vset.pattern.permute.xlu0 10
    %176 = vperm.xlu0 %175, %v63
    %v177 = vpop.permute.xlu0 %176
    %v179 = vlaneseq
    %v180 = vshrl.u32 %v179, 7
    %v181 = vsub.s32 2, %v180
    %v182 = vrot.slane %v65, %v181
    %v183 = vmul.f32 %v177, %v182
    %v184 = vadd.f32 %v174, %v183
    %185 = vset.pattern.permute.xlu0 11
    %186 = vperm.xlu0 %185, %v63
    %v187 = vpop.permute.xlu0 %186
    %v189 = vlaneseq
    %v190 = vshrl.u32 %v189, 7
    %v191 = vsub.s32 3, %v190
    %v192 = vrot.slane %v65, %v191
    %v193 = vmul.f32 %v187, %v192
    %v194 = vadd.f32 %v184, %v193
    %195 = vset.pattern.permute.xlu0 12
    %196 = vperm.xlu0 %195, %v63
    %v197 = vpop.permute.xlu0 %196
    %v199 = vlaneseq
    %v200 = vshrl.u32 %v199, 7
    %v201 = vsub.s32 4, %v200
    %v202 = vrot.slane %v65, %v201
    %v203 = vmul.f32 %v197, %v202
    %v204 = vadd.f32 %v194, %v203
    %205 = vset.pattern.permute.xlu0 13
    %206 = vperm.xlu0 %205, %v63
    %v207 = vpop.permute.xlu0 %206
    %v209 = vlaneseq
    %v210 = vshrl.u32 %v209, 7
    %v211 = vsub.s32 5, %v210
    %v212 = vrot.slane %v65, %v211
    %v213 = vmul.f32 %v207, %v212
    %v214 = vadd.f32 %v204, %v213
    %215 = vset.pattern.permute.xlu0 14
    %216 = vperm.xlu0 %215, %v63
    %v217 = vpop.permute.xlu0 %216
    %v219 = vlaneseq
    %v220 = vshrl.u32 %v219, 7
    %v221 = vsub.s32 6, %v220
    %v222 = vrot.slane %v65, %v221
    %v223 = vmul.f32 %v217, %v222
    %v224 = vadd.f32 %v214, %v223
    %225 = vset.pattern.permute.xlu0 15
    %226 = vperm.xlu0 %225, %v63
    %v227 = vpop.permute.xlu0 %226
    %v229 = vlaneseq
    %v230 = vshrl.u32 %v229, 7
    %v231 = vsub.s32 7, %v230
    %v232 = vrot.slane %v65, %v231
    %v233 = vmul.f32 %v227, %v232
    %v234 = vadd.f32 %v224, %v233
    %235 = vset.pattern.permute.xlu0 16
    %236 = vperm.xlu0 %235, %v63
    %v237 = vpop.permute.xlu0 %236
    %v239 = vlaneseq
    %v240 = vshrl.u32 %v239, 7
    %v241 = vsub.s32 0, %v240
    %v242 = vrot.slane %v66, %v241
    %v243 = vmul.f32 %v237, %v242
    %v244 = vadd.f32 %v234, %v243
    %245 = vset.pattern.permute.xlu0 17
    %246 = vperm.xlu0 %245, %v63
    %v247 = vpop.permute.xlu0 %246
    %v249 = vlaneseq
    %v250 = vshrl.u32 %v249, 7
    %v251 = vsub.s32 1, %v250
    %v252 = vrot.slane %v66, %v251
    %v253 = vmul.f32 %v247, %v252
    %v254 = vadd.f32 %v244, %v253
    %255 = vset.pattern.permute.xlu0 18
    %256 = vperm.xlu0 %255, %v63
    %v257 = vpop.permute.xlu0 %256
    %v259 = vlaneseq
    %v260 = vshrl.u32 %v259, 7
    %v261 = vsub.s32 2, %v260
    %v262 = vrot.slane %v66, %v261
    %v263 = vmul.f32 %v257, %v262
    %v264 = vadd.f32 %v254, %v263
    %265 = vset.pattern.permute.xlu0 19
    %266 = vperm.xlu0 %265, %v63
    %v267 = vpop.permute.xlu0 %266
    %v269 = vlaneseq
    %v270 = vshrl.u32 %v269, 7
    %v271 = vsub.s32 3, %v270
    %v272 = vrot.slane %v66, %v271
    %v273 = vmul.f32 %v267, %v272
    %v274 = vadd.f32 %v264, %v273
    %275 = vset.pattern.permute.xlu0 20
    %276 = vperm.xlu0 %275, %v63
    %v277 = vpop.permute.xlu0 %276
    %v279 = vlaneseq
    %v280 = vshrl.u32 %v279, 7
    %v281 = vsub.s32 4, %v280
    %v282 = vrot.slane %v66, %v281
    %v283 = vmul.f32 %v277, %v282
    %v284 = vadd.f32 %v274, %v283
    %285 = vset.pattern.permute.xlu0 21
    %286 = vperm.xlu0 %285, %v63
    %v287 = vpop.permute.xlu0 %286
    %v289 = vlaneseq
    %v290 = vshrl.u32 %v289, 7
    %v291 = vsub.s32 5, %v290
    %v292 = vrot.slane %v66, %v291
    %v293 = vmul.f32 %v287, %v292
    %v294 = vadd.f32 %v284, %v293
    %295 = vset.pattern.permute.xlu0 22
    %296 = vperm.xlu0 %295, %v63
    %v297 = vpop.permute.xlu0 %296
    %v299 = vlaneseq
    %v300 = vshrl.u32 %v299, 7
    %v301 = vsub.s32 6, %v300
    %v302 = vrot.slane %v66, %v301
    %v303 = vmul.f32 %v297, %v302
    %v304 = vadd.f32 %v294, %v303
    %305 = vset.pattern.permute.xlu0 23
    %306 = vperm.xlu0 %305, %v63
    %v307 = vpop.permute.xlu0 %306
    %v309 = vlaneseq
    %v310 = vshrl.u32 %v309, 7
    %v311 = vsub.s32 7, %v310
    %v312 = vrot.slane %v66, %v311
    %v313 = vmul.f32 %v307, %v312
    %v314 = vadd.f32 %v304, %v313
    %v315 = vld [vmem:[#allocation7] sm:$0xff]
    %v316 = vld [vmem:[#allocation7 + $0x8] sm:$0xff]
    %v317 = vld [vmem:[#allocation7 + $0x10] sm:$0xff]
    %v318 = vld [vmem:[#allocation7 + $0x18] sm:$0xff]
    %v319 = vld [vmem:[#allocation7 + $0x20] sm:$0xff]
    %v320 = vld [vmem:[#allocation7 + $0x28] sm:$0xff]
    %v321 = vld [vmem:[#allocation7 + $0x30] sm:$0xff]
    %v322 = vld [vmem:[#allocation7 + $0x38] sm:$0xff]
    %v323 = vld [vmem:[#allocation7 + $0x40] sm:$0xff]
    %v324 = vld [vmem:[#allocation7 + $0x48] sm:$0xff]
    %v325 = vld [vmem:[#allocation7 + $0x50] sm:$0xff]
    %v326 = vld [vmem:[#allocation7 + $0x58] sm:$0xff]
    %v327 = vld [vmem:[#allocation7 + $0x60] sm:$0xff]
    %v328 = vld [vmem:[#allocation7 + $0x68] sm:$0xff]
    %v329 = vld [vmem:[#allocation7 + $0x70] sm:$0xff]
    %v330 = vld [vmem:[#allocation7 + $0x78] sm:$0xff]
    %331 = vmatprep.subr.mxu0 0.0
    %332 = vmatpush1.msra.mxu0 %v315
    %333 = vmatprep.subr.mxu0 0.0
    %334 = vmatpush1.msra.mxu0 %v316
    %335 = vmatprep.subr.mxu0 0.0
    %336 = vmatpush1.msra.mxu0 %v317
    %337 = vmatprep.subr.mxu0 0.0
    %338 = vmatpush1.msra.mxu0 %v318
    %339 = vmatprep.subr.mxu0 0.0
    %340 = vmatpush1.msra.mxu0 %v319
    %341 = vmatprep.subr.mxu0 0.0
    %342 = vmatpush1.msra.mxu0 %v320
    %343 = vmatprep.subr.mxu0 0.0
    %344 = vmatpush1.msra.mxu0 %v321
    %345 = vmatprep.subr.mxu0 0.0
    %346 = vmatpush1.msra.mxu0 %v322
    %347 = vmatprep.subr.mxu0 0.0
    %348 = vmatpush1.msra.mxu0 %v323
    %349 = vmatprep.subr.mxu0 0.0
    %350 = vmatpush1.msra.mxu0 %v324
    %351 = vmatprep.subr.mxu0 0.0
    %352 = vmatpush1.msra.mxu0 %v325
    %353 = vmatprep.subr.mxu0 0.0
    %354 = vmatpush1.msra.mxu0 %v326
    %355 = vmatprep.subr.mxu0 0.0
    %356 = vmatpush1.msra.mxu0 %v327
    %357 = vmatprep.subr.mxu0 0.0
    %358 = vmatpush1.msra.mxu0 %v328
    %359 = vmatprep.subr.mxu0 0.0
    %360 = vmatpush1.msra.mxu0 %v329
    %361 = vmatprep.subr.mxu0 0.0
    %362 = vmatpush1.msra.mxu0 %v330
    %363 = vmatprep.subr.mxu0 0.0
    %364 = vmatpush1.msra.mxu0 0.0
    %365 = vmatprep.subr.mxu0 0.0
    %366 = vmatpush1.msra.mxu0 0.0
    %367 = vmatprep.subr.mxu0 0.0
    %368 = vmatpush1.msra.mxu0 0.0
    %369 = vmatprep.subr.mxu0 0.0
    %370 = vmatpush1.msra.mxu0 0.0
    %371 = vmatprep.subr.mxu0 0.0
    %372 = vmatpush1.msra.mxu0 0.0
    %373 = vmatprep.subr.mxu0 0.0
    %374 = vmatpush1.msra.mxu0 0.0
    %375 = vmatprep.subr.mxu0 0.0
    %376 = vmatpush1.msra.mxu0 0.0
    %377 = vmatprep.subr.mxu0 0.0
    %378 = vmatpush1.msra.mxu0 0.0
    %379 = vmatprep.subr.mxu0 0.0
    %380 = vmatpush1.msra.mxu0 0.0
    %381 = vmatprep.subr.mxu0 0.0
    %382 = vmatpush1.msra.mxu0 0.0
    %383 = vmatprep.subr.mxu0 0.0
    %384 = vmatpush1.msra.mxu0 0.0
    %385 = vmatprep.subr.mxu0 0.0
    %386 = vmatpush1.msra.mxu0 0.0
    %387 = vmatprep.subr.mxu0 0.0
    %388 = vmatpush1.msra.mxu0 0.0
    %389 = vmatprep.subr.mxu0 0.0
    %390 = vmatpush1.msra.mxu0 0.0
    %391 = vmatprep.subr.mxu0 0.0
    %392 = vmatpush1.msra.mxu0 0.0
    %393 = vmatprep.subr.mxu0 0.0
    %394 = vmatpush1.msra.mxu0 0.0
    %395 = vmatprep.mubr.f32.mxu0 0.0
    %396 = vmatmul.mubr.f32.gmra.mrb[0].mxu0 %v314
    %v397 = vpop.f32.mrb[0].mxu0
    %v398 = vadd.f32 0.0, %v397
    %v399 = vpop.f32.mrb[0].mxu0
    %400 = vdwg.mxu0
    %v401 = vsub.f32 %v314, %v398
    %v402 = vmul.f32 %v401, %v401
    %403 = vmatprep.subr.mxu0 0.0
    %404 = vmatpush1.msra.mxu0 %v315
    %405 = vmatprep.subr.mxu0 0.0
    %406 = vmatpush1.msra.mxu0 %v316
    %407 = vmatprep.subr.mxu0 0.0
    %408 = vmatpush1.msra.mxu0 %v317
    %409 = vmatprep.subr.mxu0 0.0
    %410 = vmatpush1.msra.mxu0 %v318
    %411 = vmatprep.subr.mxu0 0.0
    %412 = vmatpush1.msra.mxu0 %v319
    %413 = vmatprep.subr.mxu0 0.0
    %414 = vmatpush1.msra.mxu0 %v320
    %415 = vmatprep.subr.mxu0 0.0
    %416 = vmatpush1.msra.mxu0 %v321
    %417 = vmatprep.subr.mxu0 0.0
    %418 = vmatpush1.msra.mxu0 %v322
    %419 = vmatprep.subr.mxu0 0.0
    %420 = vmatpush1.msra.mxu0 %v323
    %421 = vmatprep.subr.mxu0 0.0
    %422 = vmatpush1.msra.mxu0 %v324
    %423 = vmatprep.subr.mxu0 0.0
    %424 = vmatpush1.msra.mxu0 %v325
    %425 = vmatprep.subr.mxu0 0.0
    %426 = vmatpush1.msra.mxu0 %v326
    %427 = vmatprep.subr.mxu0 0.0
    %428 = vmatpush1.msra.mxu0 %v327
    %429 = vmatprep.subr.mxu0 0.0
    %430 = vmatpush1.msra.mxu0 %v328
    %431 = vmatprep.subr.mxu0 0.0
    %432 = vmatpush1.msra.mxu0 %v329
    %433 = vmatprep.subr.mxu0 0.0
    %434 = vmatpush1.msra.mxu0 %v330
    %435 = vmatprep.subr.mxu0 0.0
    %436 = vmatpush1.msra.mxu0 0.0
    %437 = vmatprep.subr.mxu0 0.0
    %438 = vmatpush1.msra.mxu0 0.0
    %439 = vmatprep.subr.mxu0 0.0
    %440 = vmatpush1.msra.mxu0 0.0
    %441 = vmatprep.subr.mxu0 0.0
    %442 = vmatpush1.msra.mxu0 0.0
    %443 = vmatprep.subr.mxu0 0.0
    %444 = vmatpush1.msra.mxu0 0.0
    %445 = vmatprep.subr.mxu0 0.0
    %446 = vmatpush1.msra.mxu0 0.0
    %447 = vmatprep.subr.mxu0 0.0
    %448 = vmatpush1.msra.mxu0 0.0
    %449 = vmatprep.subr.mxu0 0.0
    %450 = vmatpush1.msra.mxu0 0.0
    %451 = vmatprep.subr.mxu0 0.0
    %452 = vmatpush1.msra.mxu0 0.0
    %453 = vmatprep.subr.mxu0 0.0
    %454 = vmatpush1.msra.mxu0 0.0
    %455 = vmatprep.subr.mxu0 0.0
    %456 = vmatpush1.msra.mxu0 0.0
    %457 = vmatprep.subr.mxu0 0.0
    %458 = vmatpush1.msra.mxu0 0.0
    %459 = vmatprep.subr.mxu0 0.0
    %460 = vmatpush1.msra.mxu0 0.0
    %461 = vmatprep.subr.mxu0 0.0
    %462 = vmatpush1.msra.mxu0 0.0
    %463 = vmatprep.subr.mxu0 0.0
    %464 = vmatpush1.msra.mxu0 0.0
    %465 = vmatprep.subr.mxu0 0.0
    %466 = vmatpush1.msra.mxu0 0.0
    %467 = vmatprep.mubr.f32.mxu0 0.0
    %468 = vmatmul.mubr.f32.gmra.mrb[0].mxu0 %v402
    %v469 = vpop.f32.mrb[0].mxu0
    %v470 = vadd.f32 1e-12, %v469
    %v471 = vpop.f32.mrb[0].mxu0
    %472 = vdwg.mxu0
    %v473 = vrsqrt.pop %v470
    %v474 = vmul.f32 %v401, %v473
    %v475 = vld [vmem:[%s4] sm:$0x1]
    %v477 = vlaneseq
    %v478 = vshrl.u32 %v477, 7
    %v479 = vsub.s32 0, %v478
    %v480 = vrot.slane %v475, %v479
    %v482 = vmul.f32 %v474, %v480
    %v483 = vld [vmem:[%s5] sm:$0x1]
    %v485 = vlaneseq
    %v486 = vshrl.u32 %v485, 7
    %v487 = vsub.s32 0, %v486
    %v488 = vrot.slane %v483, %v487
    %v490 = vadd.f32 %v482, %v488
    %491 = vst [vmem:[#allocation8] sm:$0xff] %v490
    // Predicated region
    $region38: #{tpu_custom_call.1} parent=1 // pred_check
      _
    $region39: #{tpu_custom_call.1} parent=1 // pred_check_branch
      %493 = sbr.rel (0) target = $region41
    $region40: #{tpu_custom_call.1} parent=1 // pred_region
      %s495 = ssub.s32 128, 128
      %496 = vsyncadd [#allocation4], %s495
      %s498 = sshll.u32 [#allocation8], 4
      %s499 = int_to_ptr.vmem [resolvable:$true] %s498
      %501 = dma.vmem_to_hbm [thread:$0]  %s499, 128, %s6, [#allocation4]
    $region41: #{tpu_custom_call.1} parent=1 // pred_fallthru
      _
    // Predicated region
    $region42: #{tpu_custom_call.1} parent=1 // pred_check
      _
    $region43: #{tpu_custom_call.1} parent=1 // pred_check_branch
      %503 = sbr.rel (0) target = $region45
    $region44: #{tpu_custom_call.1} parent=1 // pred_region
      %504 = dma.done [#allocation4], 128
    $region45: #{tpu_custom_call.1} parent=1 // pred_fallthru
      _
    %505 = vsyncpa [#allocation3], 1
    %506 = vsyncpa [#allocation6], 1
    %507 = vsyncpa [#allocation4], 1

</llo_original>
